<compile_context>
chip_gen: v5e
topology: v5e:2x2
jax: 0.10.0
libtpu: 0.0.40
codegen_flags: <defaults>
</compile_context>

<pallas_src>
import functools
import math

import jax
import jax.numpy as jnp
from jax import lax
from jax.experimental import pallas as pl
from jax.experimental.pallas import tpu as pltpu


_MASK_VALUE = -1000000.0  # matches sequence_mask(value=-1e6) in the reference


def _round_up(x, m):
    return (x + m - 1) // m * m


def _flash_kernel(minl_ref, maxl_ref, lastk_ref, vlen_ref, q_ref, k_ref, v_ref,
                  o_ref, m_sc, l_sc, acc_sc, qs_sc, *, scale):
    """Grid = (batch, q_tile, k_tile); k_tile is the (arbitrary) reduction axis.

    minl/maxl/lastk : SMEM (B, nq) int32 scalar-prefetch tables
    vlen_ref : VMEM (1, tq, 1) int32   per-query valid length (clamped to Tk)
    q_ref    : VMEM (1, tq, D)
    k_ref    : VMEM (1, tk, D)
    v_ref    : VMEM (1, tk, Dv_p)
    o_ref    : VMEM (1, tq, Dv_p)      written on the last k tile
    m/l/acc  : f32 VMEM scratch online-softmax state
    qs_sc    : (tq, D) scaled-Q cache (native dtype), filled once per q tile
    """
    del lastk_ref  # only consumed by the K/V index_maps
    b = pl.program_id(0)
    qi = pl.program_id(1)
    ki = pl.program_id(2)
    tk = k_ref.shape[1]
    kstart = ki * tk

    @pl.when(ki == 0)
    def _init():
        m_sc[...] = jnp.full(m_sc.shape, -1e30, jnp.float32)
        l_sc[...] = jnp.zeros(l_sc.shape, jnp.float32)
        acc_sc[...] = jnp.zeros(acc_sc.shape, jnp.float32)
        # Fold 1/sqrt(d) into Q once per q tile (multiply in f32, round once);
        # reused by every k step, keeps native-dtype MXU operands.
        qs_sc[...] = (q_ref[0].astype(jnp.float32) * scale).astype(qs_sc.dtype)

    max_v = maxl_ref[b, qi]
    min_v = minl_ref[b, qi]

    # Skip k tiles that are fully masked for every query row of this block.
    @pl.when(kstart < max_v)
    def _update():
        # dot_general contracts the last dim of both operands -> no explicit
        # K transpose (no XLU pass); f32 accumulation on the MXU.
        s = lax.dot_general(qs_sc[...], k_ref[0], (((1,), (1,)), ((), ())),
                            preferred_element_type=jnp.float32)    # (tq, tk)

        def online_update(scores):
            m_prev = m_sc[...]
            m_new = jnp.maximum(m_prev, jnp.max(scores, axis=-1, keepdims=True))
            alpha = jnp.exp(m_prev - m_new)
            p = jnp.exp(scores - m_new)                             # (tq, tk)
            l_sc[...] = alpha * l_sc[...] + jnp.sum(p, axis=-1, keepdims=True)
            acc_sc[...] = alpha * acc_sc[...] + jnp.dot(
                p.astype(v_ref.dtype), v_ref[0],
                preferred_element_type=jnp.float32)
            m_sc[...] = m_new

        fully_valid = kstart + tk <= min_v

        @pl.when(fully_valid)          # no mask work when the whole tile is valid
        def _():
            online_update(s)

        @pl.when(jnp.logical_not(fully_valid))
        def _():
            col = lax.broadcasted_iota(jnp.int32, s.shape, 1) + kstart
            online_update(jnp.where(col < vlen_ref[0], s, _MASK_VALUE))

    @pl.when(ki == pl.num_programs(2) - 1)
    def _finalize():
        # Exact divide (approx reciprocal costs ~1e-3 relative error).
        # l == 0 only for degenerate valid_len == 0 rows (acc is exactly 0
        # there); the clamp avoids NaN for that case.
        l = jnp.maximum(l_sc[...], 1e-30)
        o_ref[0] = (acc_sc[...] / l).astype(o_ref.dtype)


def _weights_kernel(vlen_ref, q_ref, k_ref, v_ref, o_ref, w_ref, *, scale):
    """Inspection path: grid = (batch, q_tile), full Tk per block, also emits
    the normalized attention weights (mirrors self.attention_weights)."""
    qs = (q_ref[0].astype(jnp.float32) * scale).astype(q_ref.dtype)
    s = lax.dot_general(qs, k_ref[0], (((1,), (1,)), ((), ())),
                        preferred_element_type=jnp.float32)        # (tq, Tk_p)
    col = lax.broadcasted_iota(jnp.int32, s.shape, 1)
    s = jnp.where(col < vlen_ref[0], s, _MASK_VALUE)
    m = jnp.max(s, axis=-1, keepdims=True)
    e = jnp.exp(s - m)
    w = e / jnp.sum(e, axis=-1, keepdims=True)                     # exact norm
    w_ref[0] = w.astype(w_ref.dtype)
    o_ref[0] = jnp.dot(w.astype(v_ref.dtype), v_ref[0],
                       preferred_element_type=jnp.float32).astype(o_ref.dtype)


def dot_product_attention(queries, keys, values, valid_lens=None, *,
                          return_weights=False, block_q=256, block_k=512,
                          weights_dtype=jnp.float32):
    """Pallas implementation of DotProductAttention.forward (eval mode).

    Returns `out`, or `(out, attention_weights)` if return_weights=True.
    """
    B, Tq, D = queries.shape
    _, Tk, Dv = values.shape
    assert keys.shape == (B, Tk, D)

    # Normalize valid_lens to a per-query (B, Tq) int32 table, clamped to Tk
    # (a no-op w.r.t. reference semantics; keeps padded key columns masked).
    if valid_lens is None:
        vlen = jnp.full((B, Tq), Tk, dtype=jnp.int32)
    elif valid_lens.ndim == 1:
        vlen = jnp.broadcast_to(valid_lens.astype(jnp.int32)[:, None], (B, Tq))
    else:
        vlen = valid_lens.astype(jnp.int32)
    vlen = jnp.minimum(vlen, Tk)

    # Tile sizes.  tk has a 128 floor (lane-dense score tiles / MXU N dim);
    # tq is a multiple of 128 when Tq allows, else a multiple of 16 (bf16
    # sublane packing).  The contraction dim D is NOT padded (block dim ==
    # full array dim is legal; MXU pass count unchanged); Dv IS padded to 128
    # so output stores stay lane-dense.
    tq = min(_round_up(block_q, 128), _round_up(Tq, 16))
    tk = min(_round_up(block_k, 128), _round_up(Tk, 128))
    Tq_p = _round_up(Tq, tq)
    Tk_p = _round_up(Tk, tk)
    # v7x megacore: keep >= 2 (batch, q-tile) slices on the parallel grid axes.
    if B * (Tq_p // tq) < 2 and tq > 16:
        tq = max(16, _round_up(tq // 2, 16))
        Tq_p = _round_up(Tq, tq)
    Dv_p = _round_up(Dv, 128)

    # Pad only when actually needed (jnp.pad is a full HBM read+write).
    q = queries if Tq_p == Tq else jnp.pad(queries,
                                           ((0, 0), (0, Tq_p - Tq), (0, 0)))
    k = keys if Tk_p == Tk else jnp.pad(keys, ((0, 0), (0, Tk_p - Tk), (0, 0)))
    if Tk_p != Tk or Dv_p != Dv:
        v = jnp.pad(values, ((0, 0), (0, Tk_p - Tk), (0, Dv_p - Dv)))
    else:
        v = values
    # Edge-pad query rows so padded rows never create degenerate 0 lengths.
    vlen_p = vlen if Tq_p == Tq else jnp.pad(vlen, ((0, 0), (0, Tq_p - Tq)),
                                             mode="edge")
    vlen3 = vlen_p[:, :, None]                                    # (B, Tq_p, 1)

    scale = 1.0 / math.sqrt(D)        # scale uses the ORIGINAL feature dim
    out_dtype = queries.dtype
    nq = Tq_p // tq

    if not return_weights:
        nk = Tk_p // tk
        # Per-(batch, q-tile) min/max valid length (SMEM scalar prefetch):
        # gates per-k-tile mask work / full-tile skips, and clamps the K/V
        # index_map so fully-masked trailing k tiles are not re-fetched.
        blk = vlen_p.reshape(B, nq, tq)
        minlen = blk.min(axis=-1).astype(jnp.int32)
        maxlen = blk.max(axis=-1).astype(jnp.int32)
        lastk = jnp.maximum((maxlen + tk - 1) // tk - 1, 0).astype(jnp.int32)

        def q_map(b, qi, ki, minl, maxl, lk):
            return (b, qi, 0)

        def kv_map(b, qi, ki, minl, maxl, lk):
            return (b, jnp.minimum(ki, lk[b, qi]), 0)

        out = pl.pallas_call(
            functools.partial(_flash_kernel, scale=scale),
            grid_spec=pltpu.PrefetchScalarGridSpec(
                num_scalar_prefetch=3,
                grid=(B, nq, nk),
                in_specs=[
                    pl.BlockSpec((1, tq, 1), q_map),
                    pl.BlockSpec((1, tq, D), q_map),
                    pl.BlockSpec((1, tk, D), kv_map),
                    pl.BlockSpec((1, tk, Dv_p), kv_map),
                ],
                out_specs=pl.BlockSpec((1, tq, Dv_p), q_map),
                scratch_shapes=[
                    pltpu.VMEM((tq, 1), jnp.float32),
                    pltpu.VMEM((tq, 1), jnp.float32),
                    pltpu.VMEM((tq, Dv_p), jnp.float32),
                    pltpu.VMEM((tq, D), queries.dtype),
                ]),
            out_shape=jax.ShapeDtypeStruct((B, Tq_p, Dv_p), out_dtype),
            compiler_params=pltpu.CompilerParams(
                dimension_semantics=("parallel", "parallel", "arbitrary"),
                vmem_limit_bytes=32 * 1024 * 1024),
        )(minlen, maxlen, lastk, vlen3, q, k, v)
        if Tq_p == Tq and Dv_p == Dv:
            return out
        return out[:, :Tq, :Dv]

    # Inspection path (weights also returned).  Full key axis per block so the
    # weights can be emitted already normalized; intended for modest Tk.
    # TODO(synk): tile Tk with a two-pass normalization if this path is ever
    # used with multi-thousand Tk (full-Tk K/V blocks + f32 weights in VMEM).
    out, w = pl.pallas_call(
        functools.partial(_weights_kernel, scale=scale),
        grid_spec=pltpu.PrefetchScalarGridSpec(
            num_scalar_prefetch=0,
            grid=(B, nq),
            in_specs=[
                pl.BlockSpec((1, tq, 1), lambda b, qi: (b, qi, 0)),
                pl.BlockSpec((1, tq, D), lambda b, qi: (b, qi, 0)),
                pl.BlockSpec((1, Tk_p, D), lambda b, qi: (b, 0, 0)),
                pl.BlockSpec((1, Tk_p, Dv_p), lambda b, qi: (b, 0, 0)),
            ],
            out_specs=[
                pl.BlockSpec((1, tq, Dv_p), lambda b, qi: (b, qi, 0)),
                pl.BlockSpec((1, tq, Tk_p), lambda b, qi: (b, qi, 0)),
            ]),
        out_shape=(
            jax.ShapeDtypeStruct((B, Tq_p, Dv_p), out_dtype),
            jax.ShapeDtypeStruct((B, Tq_p, Tk_p), weights_dtype),
        ),
        compiler_params=pltpu.CompilerParams(
            dimension_semantics=("parallel", "parallel"),
            vmem_limit_bytes=32 * 1024 * 1024),
    )(vlen3, q, k, v)
    out = out if (Tq_p == Tq and Dv_p == Dv) else out[:, :Tq, :Dv]
    w = w if (Tq_p == Tq and Tk_p == Tk) else w[:, :Tq, :Tk]
    return out, w


def _reference(queries, keys, values, valid_lens):
    """Pure-JAX reference mirroring the PyTorch module (eval mode), in f32."""
    q = queries.astype(jnp.float32)
    k = keys.astype(jnp.float32)
    v = values.astype(jnp.float32)
    d = queries.shape[-1]
    scores = jnp.einsum("bqd,bkd->bqk", q, k) / math.sqrt(d)
    if valid_lens is not None:
        if valid_lens.ndim == 1:
            vl = valid_lens[:, None, None]
        else:
            vl = valid_lens[:, :, None]
        col = jnp.arange(scores.shape[-1])[None, None, :]
        scores = jnp.where(col < vl, scores, _MASK_VALUE)
    w = jax.nn.softmax(scores, axis=-1)
    return jnp.einsum("bqk,bkv->bqv", w, v), w


if __name__ == "__main__":
    key = jax.random.PRNGKey(0)

    # --- demo shapes (batch=2, seq=8, hidden=32) ---
    B, Tq, Tk, D, Dv = 2, 8, 8, 32, 32
    kq, kk, kv = jax.random.split(key, 3)
    queries = jax.random.normal(kq, (B, Tq, D), dtype=jnp.float32)
    keys = jax.random.normal(kk, (B, Tk, D), dtype=jnp.float32)
    values = jax.random.normal(kv, (B, Tk, Dv), dtype=jnp.float32)
    valid_lens = jnp.array([3, 6], dtype=jnp.int32)

    ref_out, ref_w = _reference(queries, keys, values, valid_lens)

    # Main (flash) path: forward output only, matching the module's return.
    out = jax.block_until_ready(
        dot_product_attention(queries, keys, values, valid_lens))
    assert jnp.allclose(out, ref_out, atol=2e-2, rtol=2e-2), "flash out mismatch"

    # Inspection path: also returns attention_weights.
    out_w, attn_w = dot_product_attention(queries, keys, values, valid_lens,
                                          return_weights=True)
    out_w = jax.block_until_ready(out_w)
    attn_w = jax.block_until_ready(attn_w)
    assert jnp.allclose(out_w, ref_out, atol=2e-2, rtol=2e-2), "weights-path out"
    assert jnp.allclose(attn_w, ref_w, atol=2e-2, rtol=2e-2), "attention weights"

    # Padded shapes + per-query (B, Tq) valid_lens (exercises masking gates).
    B2, Tq2, Tk2, D2, Dv2 = 2, 16, 40, 32, 48
    k1, k2, k3, k4 = jax.random.split(jax.random.PRNGKey(1), 4)
    q2 = jax.random.normal(k1, (B2, Tq2, D2), dtype=jnp.float32)
    kk2 = jax.random.normal(k2, (B2, Tk2, D2), dtype=jnp.float32)
    v2 = jax.random.normal(k3, (B2, Tk2, Dv2), dtype=jnp.float32)
    vl2 = jax.random.randint(k4, (B2, Tq2), 1, Tk2 + 1).astype(jnp.int32)
    ref2, _ = _reference(q2, kk2, v2, vl2)
    out2 = jax.block_until_ready(
        dot_product_attention(q2, kk2, v2, vl2, block_q=128, block_k=128))
    assert jnp.allclose(out2, ref2, atol=2e-2, rtol=2e-2), "tiled out mismatch"

    # bf16 operands to the MXU (f32 accumulation); looser tolerance.
    out_bf = jax.block_until_ready(dot_product_attention(
        queries.astype(jnp.bfloat16), keys.astype(jnp.bfloat16),
        values.astype(jnp.bfloat16), valid_lens))
    assert jnp.allclose(out_bf.astype(jnp.float32), ref_out,
                        atol=5e-2, rtol=5e-2), "bf16 out mismatch"

    # valid_lens=None (no masking beyond key padding).
    ref3, _ = _reference(queries, keys, values, None)
    out3 = jax.block_until_ready(
        dot_product_attention(queries, keys, values, None))
    assert jnp.allclose(out3, ref3, atol=2e-2, rtol=2e-2), "no-mask out mismatch"

    print("KERNEL_OK")
</pallas_src>

<mosaic_0001>
module attributes {stable_mosaic.version = 11 : i64} {
  func.func @_flash_kernel(%arg0: i32, %arg1: i32, %arg2: i32, %arg3: memref<2x1xi32, #tpu.memory_space<smem>>, %arg4: memref<2x1xi32, #tpu.memory_space<smem>>, %arg5: memref<2x1xi32, #tpu.memory_space<smem>>, %arg6: memref<1x16x1xi32, #tpu.memory_space<vmem>>, %arg7: memref<1x16x32xf32, #tpu.memory_space<vmem>>, %arg8: memref<1x128x32xf32, #tpu.memory_space<vmem>>, %arg9: memref<1x128x128xf32, #tpu.memory_space<vmem>>, %arg10: memref<1x16x128xf32, #tpu.memory_space<vmem>>, %arg11: memref<16x1xf32, #tpu.memory_space<vmem>>, %arg12: memref<16x1xf32, #tpu.memory_space<vmem>>, %arg13: memref<16x128xf32, #tpu.memory_space<vmem>>, %arg14: memref<16x32xf32, #tpu.memory_space<vmem>>) attributes {dimension_semantics = [#tpu.dimension_semantics<parallel>, #tpu.dimension_semantics<parallel>, #tpu.dimension_semantics<arbitrary>], iteration_bounds = array<i64: 2, 1, 1>, scalar_prefetch = 3 : i64, scratch_operands = 4 : i64, tpu.core_type = #tpu.core_type<tc>, window_params = [{transform_indices = @transform_0, window_bounds = array<i64: 1, 16, 1>}, {transform_indices = @transform_1, window_bounds = array<i64: 1, 16, 32>}, {transform_indices = @transform_2, window_bounds = array<i64: 1, 128, 32>}, {transform_indices = @transform_3, window_bounds = array<i64: 1, 128, 128>}, {transform_indices = @transform_4, window_bounds = array<i64: 1, 16, 128>}]} {
    %c128_i32 = arith.constant 128 : i32
    %0 = arith.muli %arg2, %c128_i32 : i32
    %c0_i32 = arith.constant 0 : i32
    %1 = arith.cmpi eq, %arg2, %c0_i32 : i32
    %2 = arith.extui %1 : i1 to i32
    %c0_i32_0 = arith.constant 0 : i32
    %3 = arith.cmpi ne, %2, %c0_i32_0 : i32
    scf.if %3 {
      %cst = arith.constant -1.000000e+30 : f32
      %16 = vector.broadcast %cst : f32 to vector<16x1xf32>
      %c0 = arith.constant 0 : index
      %c0_4 = arith.constant 0 : index
      %17 = vector.load %arg11[%c0, %c0_4] : memref<16x1xf32, #tpu.memory_space<vmem>>, vector<16x1xf32>
      tpu.vector_store %arg11[%c0, %c0_4], %16 {strides = array<i32>} : memref<16x1xf32, #tpu.memory_space<vmem>>, vector<16x1xf32>,
      %cst_5 = arith.constant 0.000000e+00 : f32
      %18 = vector.broadcast %cst_5 : f32 to vector<16x1xf32>
      %c0_6 = arith.constant 0 : index
      %c0_7 = arith.constant 0 : index
      %19 = vector.load %arg12[%c0_6, %c0_7] : memref<16x1xf32, #tpu.memory_space<vmem>>, vector<16x1xf32>
      tpu.vector_store %arg12[%c0_6, %c0_7], %18 {strides = array<i32>} : memref<16x1xf32, #tpu.memory_space<vmem>>, vector<16x1xf32>,
      %cst_8 = arith.constant 0.000000e+00 : f32
      %20 = vector.broadcast %cst_8 : f32 to vector<16x128xf32>
      %c0_9 = arith.constant 0 : index
      %c0_10 = arith.constant 0 : index
      %21 = vector.load %arg13[%c0_9, %c0_10] : memref<16x128xf32, #tpu.memory_space<vmem>>, vector<16x128xf32>
      tpu.vector_store %arg13[%c0_9, %c0_10], %20 {strides = array<i32>} : memref<16x128xf32, #tpu.memory_space<vmem>>, vector<16x128xf32>,
      %c0_11 = arith.constant 0 : index
      %c0_12 = arith.constant 0 : index
      %c0_13 = arith.constant 0 : index
      %22 = vector.load %arg7[%c0_11, %c0_12, %c0_13] : memref<1x16x32xf32, #tpu.memory_space<vmem>>, vector<1x16x32xf32>
      %23 = vector.shape_cast %22 : vector<1x16x32xf32> to vector<16x32xf32>
      %cst_14 = arith.constant 0.176776692 : f32
      %24 = vector.broadcast %cst_14 : f32 to vector<16x32xf32>
      %25 = arith.mulf %23, %24 : vector<16x32xf32>
      %c0_15 = arith.constant 0 : index
      %c0_16 = arith.constant 0 : index
      %26 = vector.load %arg14[%c0_15, %c0_16] : memref<16x32xf32, #tpu.memory_space<vmem>>, vector<16x32xf32>
      tpu.vector_store %arg14[%c0_15, %c0_16], %25 {strides = array<i32>} : memref<16x32xf32, #tpu.memory_space<vmem>>, vector<16x32xf32>,
    } else {
    }
    %4 = arith.index_cast %arg0 : i32 to index
    %5 = arith.index_cast %arg1 : i32 to index
    %6 = memref.load %arg4[%4, %5] : memref<2x1xi32, #tpu.memory_space<smem>>
    %7 = arith.index_cast %arg0 : i32 to index
    %8 = arith.index_cast %arg1 : i32 to index
    %9 = memref.load %arg3[%7, %8] : memref<2x1xi32, #tpu.memory_space<smem>>
    %10 = arith.cmpi slt, %0, %6 : i32
    %11 = arith.extui %10 : i1 to i32
    %c0_i32_1 = arith.constant 0 : i32
    %12 = arith.cmpi ne, %11, %c0_i32_1 : i32
    scf.if %12 {
      %c0 = arith.constant 0 : index
      %c0_4 = arith.constant 0 : index
      %16 = vector.load %arg14[%c0, %c0_4] : memref<16x32xf32, #tpu.memory_space<vmem>>, vector<16x32xf32>
      %c0_5 = arith.constant 0 : index
      %c0_6 = arith.constant 0 : index
      %c0_7 = arith.constant 0 : index
      %17 = vector.load %arg8[%c0_5, %c0_6, %c0_7] : memref<1x128x32xf32, #tpu.memory_space<vmem>>, vector<1x128x32xf32>
      %18 = vector.shape_cast %17 : vector<1x128x32xf32> to vector<128x32xf32>
      %cst = arith.constant dense<0.000000e+00> : vector<16x128xf32>
      %19 = tpu.matmul %16, %18, %cst {dimension_numbers = #tpu.dot_dimension_numbers<[1], [1], [0], [0], [0, 0, 1, 0], [], []>} : vector<16x32xf32>, vector<128x32xf32>, vector<16x128xf32> -> vector<16x128xf32>
      %c128_i32_8 = arith.constant 128 : i32
      %20 = arith.addi %0, %c128_i32_8 : i32
      %21 = arith.cmpi sle, %20, %9 : i32
      %22 = arith.extui %21 : i1 to i32
      %c0_i32_9 = arith.constant 0 : i32
      %23 = arith.cmpi ne, %22, %c0_i32_9 : i32
      scf.if %23 {
        %c0_11 = arith.constant 0 : index
        %c0_12 = arith.constant 0 : index
        %27 = vector.load %arg11[%c0_11, %c0_12] : memref<16x1xf32, #tpu.memory_space<vmem>>, vector<16x1xf32>
        %cst_13 = arith.constant dense<0xFF800000> : vector<16xf32>
        %28 = vector.multi_reduction <maximumf>, %19, %cst_13 [1] : vector<16x128xf32> to vector<16xf32>
        %29 = vector.shape_cast %28 : vector<16xf32> to vector<16x1xf32>
        %30 = arith.maximumf %27, %29 : vector<16x1xf32>
        %31 = arith.subf %27, %30 : vector<16x1xf32>
        %32 = math.exp %31 : vector<16x1xf32>
        %33 = vector.broadcast %30 : vector<16x1xf32> to vector<16x128xf32>
        %34 = arith.subf %19, %33 : vector<16x128xf32>
        %35 = math.exp %34 : vector<16x128xf32>
        %c0_14 = arith.constant 0 : index
        %c0_15 = arith.constant 0 : index
        %36 = vector.load %arg12[%c0_14, %c0_15] : memref<16x1xf32, #tpu.memory_space<vmem>>, vector<16x1xf32>
        %37 = arith.mulf %32, %36 : vector<16x1xf32>
        %cst_16 = arith.constant dense<0.000000e+00> : vector<16xf32>
        %38 = vector.multi_reduction <add>, %35, %cst_16 [1] : vector<16x128xf32> to vector<16xf32>
        %39 = vector.shape_cast %38 : vector<16xf32> to vector<16x1xf32>
        %40 = arith.addf %37, %39 : vector<16x1xf32>
        %c0_17 = arith.constant 0 : index
        %c0_18 = arith.constant 0 : index
        %41 = vector.load %arg12[%c0_17, %c0_18] : memref<16x1xf32, #tpu.memory_space<vmem>>, vector<16x1xf32>
        tpu.vector_store %arg12[%c0_17, %c0_18], %40 {strides = array<i32>} : memref<16x1xf32, #tpu.memory_space<vmem>>, vector<16x1xf32>,
        %c0_19 = arith.constant 0 : index
        %c0_20 = arith.constant 0 : index
        %42 = vector.load %arg13[%c0_19, %c0_20] : memref<16x128xf32, #tpu.memory_space<vmem>>, vector<16x128xf32>
        %43 = vector.broadcast %32 : vector<16x1xf32> to vector<16x128xf32>
        %44 = arith.mulf %43, %42 : vector<16x128xf32>
        %c0_21 = arith.constant 0 : index
        %c0_22 = arith.constant 0 : index
        %c0_23 = arith.constant 0 : index
        %45 = vector.load %arg9[%c0_21, %c0_22, %c0_23] : memref<1x128x128xf32, #tpu.memory_space<vmem>>, vector<1x128x128xf32>
        %46 = vector.shape_cast %45 : vector<1x128x128xf32> to vector<128x128xf32>
        %cst_24 = arith.constant dense<0.000000e+00> : vector<16x128xf32>
        %47 = tpu.matmul %35, %46, %cst_24 {dimension_numbers = #tpu.dot_dimension_numbers<[1], [0], [0], [1], [0, 0, 1, 1], [], []>} : vector<16x128xf32>, vector<128x128xf32>, vector<16x128xf32> -> vector<16x128xf32>
        %48 = arith.addf %44, %47 : vector<16x128xf32>
        %c0_25 = arith.constant 0 : index
        %c0_26 = arith.constant 0 : index
        %49 = vector.load %arg13[%c0_25, %c0_26] : memref<16x128xf32, #tpu.memory_space<vmem>>, vector<16x128xf32>
        tpu.vector_store %arg13[%c0_25, %c0_26], %48 {strides = array<i32>} : memref<16x128xf32, #tpu.memory_space<vmem>>, vector<16x128xf32>,
        %c0_27 = arith.constant 0 : index
        %c0_28 = arith.constant 0 : index
        %50 = vector.load %arg11[%c0_27, %c0_28] : memref<16x1xf32, #tpu.memory_space<vmem>>, vector<16x1xf32>
        tpu.vector_store %arg11[%c0_27, %c0_28], %30 {strides = array<i32>} : memref<16x1xf32, #tpu.memory_space<vmem>>, vector<16x1xf32>,
      } else {
      }
      %true = arith.constant true
      %24 = arith.xori %21, %true : i1
      %25 = arith.extui %24 : i1 to i32
      %c0_i32_10 = arith.constant 0 : i32
      %26 = arith.cmpi ne, %25, %c0_i32_10 : i32
      scf.if %26 {
        %27 = tpu.iota {dimensions = array<i32: 1>} : vector<16x128xi32>
        %28 = vector.broadcast %0 : i32 to vector<16x128xi32>
        %29 = arith.addi %27, %28 : vector<16x128xi32>
        %c0_11 = arith.constant 0 : index
        %c0_12 = arith.constant 0 : index
        %c0_13 = arith.constant 0 : index
        %30 = vector.load %arg6[%c0_11, %c0_12, %c0_13] : memref<1x16x1xi32, #tpu.memory_space<vmem>>, vector<1x16x1xi32>
        %31 = vector.shape_cast %30 : vector<1x16x1xi32> to vector<16x1xi32>
        %32 = vector.broadcast %31 : vector<16x1xi32> to vector<16x128xi32>
        %33 = arith.cmpi slt, %29, %32 : vector<16x128xi32>
        %cst_14 = arith.constant -1.000000e+06 : f32
        %34 = vector.broadcast %cst_14 : f32 to vector<16x128xf32>
        %35 = arith.select %33, %19, %34 : vector<16x128xi1>, vector<16x128xf32>
        %c0_15 = arith.constant 0 : index
        %c0_16 = arith.constant 0 : index
        %36 = vector.load %arg11[%c0_15, %c0_16] : memref<16x1xf32, #tpu.memory_space<vmem>>, vector<16x1xf32>
        %cst_17 = arith.constant dense<0xFF800000> : vector<16xf32>
        %37 = vector.multi_reduction <maximumf>, %35, %cst_17 [1] : vector<16x128xf32> to vector<16xf32>
        %38 = vector.shape_cast %37 : vector<16xf32> to vector<16x1xf32>
        %39 = arith.maximumf %36, %38 : vector<16x1xf32>
        %40 = arith.subf %36, %39 : vector<16x1xf32>
        %41 = math.exp %40 : vector<16x1xf32>
        %42 = vector.broadcast %39 : vector<16x1xf32> to vector<16x128xf32>
        %43 = arith.subf %35, %42 : vector<16x128xf32>
        %44 = math.exp %43 : vector<16x128xf32>
        %c0_18 = arith.constant 0 : index
        %c0_19 = arith.constant 0 : index
        %45 = vector.load %arg12[%c0_18, %c0_19] : memref<16x1xf32, #tpu.memory_space<vmem>>, vector<16x1xf32>
        %46 = arith.mulf %41, %45 : vector<16x1xf32>
        %cst_20 = arith.constant dense<0.000000e+00> : vector<16xf32>
        %47 = vector.multi_reduction <add>, %44, %cst_20 [1] : vector<16x128xf32> to vector<16xf32>
        %48 = vector.shape_cast %47 : vector<16xf32> to vector<16x1xf32>
        %49 = arith.addf %46, %48 : vector<16x1xf32>
        %c0_21 = arith.constant 0 : index
        %c0_22 = arith.constant 0 : index
        %50 = vector.load %arg12[%c0_21, %c0_22] : memref<16x1xf32, #tpu.memory_space<vmem>>, vector<16x1xf32>
        tpu.vector_store %arg12[%c0_21, %c0_22], %49 {strides = array<i32>} : memref<16x1xf32, #tpu.memory_space<vmem>>, vector<16x1xf32>,
        %c0_23 = arith.constant 0 : index
        %c0_24 = arith.constant 0 : index
        %51 = vector.load %arg13[%c0_23, %c0_24] : memref<16x128xf32, #tpu.memory_space<vmem>>, vector<16x128xf32>
        %52 = vector.broadcast %41 : vector<16x1xf32> to vector<16x128xf32>
        %53 = arith.mulf %52, %51 : vector<16x128xf32>
        %c0_25 = arith.constant 0 : index
        %c0_26 = arith.constant 0 : index
        %c0_27 = arith.constant 0 : index
        %54 = vector.load %arg9[%c0_25, %c0_26, %c0_27] : memref<1x128x128xf32, #tpu.memory_space<vmem>>, vector<1x128x128xf32>
        %55 = vector.shape_cast %54 : vector<1x128x128xf32> to vector<128x128xf32>
        %cst_28 = arith.constant dense<0.000000e+00> : vector<16x128xf32>
        %56 = tpu.matmul %44, %55, %cst_28 {dimension_numbers = #tpu.dot_dimension_numbers<[1], [0], [0], [1], [0, 0, 1, 1], [], []>} : vector<16x128xf32>, vector<128x128xf32>, vector<16x128xf32> -> vector<16x128xf32>
        %57 = arith.addf %53, %56 : vector<16x128xf32>
        %c0_29 = arith.constant 0 : index
        %c0_30 = arith.constant 0 : index
        %58 = vector.load %arg13[%c0_29, %c0_30] : memref<16x128xf32, #tpu.memory_space<vmem>>, vector<16x128xf32>
        tpu.vector_store %arg13[%c0_29, %c0_30], %57 {strides = array<i32>} : memref<16x128xf32, #tpu.memory_space<vmem>>, vector<16x128xf32>,
        %c0_31 = arith.constant 0 : index
        %c0_32 = arith.constant 0 : index
        %59 = vector.load %arg11[%c0_31, %c0_32] : memref<16x1xf32, #tpu.memory_space<vmem>>, vector<16x1xf32>
        tpu.vector_store %arg11[%c0_31, %c0_32], %39 {strides = array<i32>} : memref<16x1xf32, #tpu.memory_space<vmem>>, vector<16x1xf32>,
      } else {
      }
    } else {
    }
    %c0_i32_2 = arith.constant 0 : i32
    %13 = arith.cmpi eq, %arg2, %c0_i32_2 : i32
    %14 = arith.extui %13 : i1 to i32
    %c0_i32_3 = arith.constant 0 : i32
    %15 = arith.cmpi ne, %14, %c0_i32_3 : i32
    scf.if %15 {
      %c0 = arith.constant 0 : index
      %c0_4 = arith.constant 0 : index
      %16 = vector.load %arg12[%c0, %c0_4] : memref<16x1xf32, #tpu.memory_space<vmem>>, vector<16x1xf32>
      %cst = arith.constant 1.000000e-30 : f32
      %17 = vector.broadcast %cst : f32 to vector<16x1xf32>
      %18 = arith.maximumf %16, %17 : vector<16x1xf32>
      %c0_5 = arith.constant 0 : index
      %c0_6 = arith.constant 0 : index
      %19 = vector.load %arg13[%c0_5, %c0_6] : memref<16x128xf32, #tpu.memory_space<vmem>>, vector<16x128xf32>
      %20 = vector.broadcast %18 : vector<16x1xf32> to vector<16x128xf32>
      %21 = arith.divf %19, %20 : vector<16x128xf32>
      %c0_7 = arith.constant 0 : index
      %c0_8 = arith.constant 0 : index
      %c0_9 = arith.constant 0 : index
      %22 = vector.load %arg10[%c0_7, %c0_8, %c0_9] : memref<1x16x128xf32, #tpu.memory_space<vmem>>, vector<1x16x128xf32>
      %23 = vector.shape_cast %22 : vector<1x16x128xf32> to vector<16x128xf32>
      %24 = vector.shape_cast %21 : vector<16x128xf32> to vector<1x16x128xf32>
      tpu.vector_store %arg10[%c0_7, %c0_8, %c0_9], %24 {strides = array<i32>} : memref<1x16x128xf32, #tpu.memory_space<vmem>>, vector<1x16x128xf32>,
    } else {
    }
    return
  }
  func.func @transform_0(%arg0: i32, %arg1: i32, %arg2: i32, %arg3: memref<2x1xi32, #tpu.memory_space<smem>>, %arg4: memref<2x1xi32, #tpu.memory_space<smem>>, %arg5: memref<2x1xi32, #tpu.memory_space<smem>>) -> (i32, i32, i32) {
    %c0_i32 = arith.constant 0 : i32
    %c0_i32_0 = arith.constant 0 : i32
    return %arg0, %arg1, %c0_i32 : i32, i32, i32
  }
  func.func @transform_1(%arg0: i32, %arg1: i32, %arg2: i32, %arg3: memref<2x1xi32, #tpu.memory_space<smem>>, %arg4: memref<2x1xi32, #tpu.memory_space<smem>>, %arg5: memref<2x1xi32, #tpu.memory_space<smem>>) -> (i32, i32, i32) {
    %c0_i32 = arith.constant 0 : i32
    %c0_i32_0 = arith.constant 0 : i32
    return %arg0, %arg1, %c0_i32 : i32, i32, i32
  }
  func.func @transform_2(%arg0: i32, %arg1: i32, %arg2: i32, %arg3: memref<2x1xi32, #tpu.memory_space<smem>>, %arg4: memref<2x1xi32, #tpu.memory_space<smem>>, %arg5: memref<2x1xi32, #tpu.memory_space<smem>>) -> (i32, i32, i32) {
    %0 = arith.index_cast %arg0 : i32 to index
    %1 = arith.index_cast %arg1 : i32 to index
    %2 = memref.load %arg5[%0, %1] : memref<2x1xi32, #tpu.memory_space<smem>>
    %3 = arith.minsi %arg2, %2 : i32
    %c0_i32 = arith.constant 0 : i32
    %c0_i32_0 = arith.constant 0 : i32
    return %arg0, %3, %c0_i32 : i32, i32, i32
  }
  func.func @transform_3(%arg0: i32, %arg1: i32, %arg2: i32, %arg3: memref<2x1xi32, #tpu.memory_space<smem>>, %arg4: memref<2x1xi32, #tpu.memory_space<smem>>, %arg5: memref<2x1xi32, #tpu.memory_space<smem>>) -> (i32, i32, i32) {
    %0 = arith.index_cast %arg0 : i32 to index
    %1 = arith.index_cast %arg1 : i32 to index
    %2 = memref.load %arg5[%0, %1] : memref<2x1xi32, #tpu.memory_space<smem>>
    %3 = arith.minsi %arg2, %2 : i32
    %c0_i32 = arith.constant 0 : i32
    %c0_i32_0 = arith.constant 0 : i32
    return %arg0, %3, %c0_i32 : i32, i32, i32
  }
  func.func @transform_4(%arg0: i32, %arg1: i32, %arg2: i32, %arg3: memref<2x1xi32, #tpu.memory_space<smem>>, %arg4: memref<2x1xi32, #tpu.memory_space<smem>>, %arg5: memref<2x1xi32, #tpu.memory_space<smem>>) -> (i32, i32, i32) {
    %c0_i32 = arith.constant 0 : i32
    %c0_i32_0 = arith.constant 0 : i32
    return %arg0, %arg1, %c0_i32 : i32, i32, i32
  }
}

</mosaic_0001>

<llo_original>
// kernel: tpu_custom_call.1
$region0: #{tpu_custom_call.1}
  #allocation0 [shape = 'u32[]', space=smem, size = 0x4, offset = 0x4, fixed_abs, tag = 'smem constant byte address 0x4 - core index']
  #allocation1 [shape = 'u32[72,128]{1,0:T(1,128)}', space=vmem, size = 0x9000, scoped, tag = 'internal scratch']
  #allocation2 [shape = 'f32[16,1]{1,0:T(8,128)}', space=vmem, size = 0x2000, scoped, tag = 'scratch operand']
  #allocation3 [shape = 'f32[16,1]{1,0:T(8,128)}', space=vmem, size = 0x2000, scoped, tag = 'scratch operand']
  #allocation4 [shape = 'f32[16,128]{1,0:T(8,128)}', space=vmem, size = 0x2000, scoped, tag = 'scratch operand']
  #allocation5 [shape = 'f32[16,32]{1,0:T(8,128)}', space=vmem, size = 0x2000, scoped, tag = 'scratch operand']
  #allocation6 [shape = 's32[1]{0}', space=sflag, size = 0x4, scoped, tag = 'scoped memory for tpu_custom_call.1']
  #allocation7 [shape = 'u8[1024]{0}', space=smem, size = 0x400, scoped, tag = 'prefetched SMEM operand 0']
  #allocation8 [shape = 'u8[1024]{0}', space=smem, size = 0x400, scoped, tag = 'prefetched SMEM operand 1']
  #allocation9 [shape = 'u8[1024]{0}', space=smem, size = 0x400, scoped, tag = 'prefetched SMEM operand 2']
  %s0 = inlined_call_operand.vmem [shape: s32[2,1], index: 0, kind: input, shape index: {}]
  %s1 = inlined_call_operand.vmem [shape: s32[2,1], index: 1, kind: input, shape index: {}]
  %s2 = inlined_call_operand.vmem [shape: s32[2,1], index: 2, kind: input, shape index: {}]
  %s3 = inlined_call_operand.vmem [shape: s32[2,16,1], index: 3, kind: input, shape index: {}]
  %s4 = inlined_call_operand.vmem [shape: f32[2,16,32], index: 4, kind: input, shape index: {}]
  %s5 = inlined_call_operand.vmem [shape: f32[2,128,32], index: 5, kind: input, shape index: {}]
  %s6 = inlined_call_operand.vmem [shape: f32[2,128,128], index: 6, kind: input, shape index: {}]
  %s7 = inlined_call_operand.hbm [shape: f32[2,16,128], index: 7, kind: output, shape index: {}]
  %s8 = sld [smem:[#allocation0]]
  $region69: #{tpu_custom_call.1} parent=0
    _
  %s10 = ssub.s32 1, %s8
  %s11 = scalar_select 0, %s10, %s8
  %s13 = sshll.u32 %s0, 4
  %s14 = int_to_ptr.vmem [resolvable:$true] %s13
  %16 = dma.vmem_to_smem %s14, 32, [#allocation7], [#allocation6]
  %s18 = sshll.u32 %s1, 4
  %s19 = int_to_ptr.vmem [resolvable:$true] %s18
  %21 = dma.vmem_to_smem %s19, 32, [#allocation8], [#allocation6]
  %s23 = sshll.u32 %s2, 4
  %s24 = int_to_ptr.vmem [resolvable:$true] %s23
  %26 = dma.vmem_to_smem %s24, 32, [#allocation9], [#allocation6]
  %28 = dma.done [#allocation6], 96
  %29 = sfence
  $region1: #{tpu_custom_call.1} parent=0
    #allocation10 [shape = 'u8[16384]{0}', space=vmem, size = 0x4000, scoped, tag = 'output window, operand 0']
    #allocation11 [shape = 's32[2]{0}', space=sflag, size = 0x8, scoped, tag = 'scoped memory for tpu_custom_call.1']
    %30 = vsyncpa [#allocation11], 0
    %s31 = scalar_lea.sflag [#allocation11], 1
    %32 = vsyncpa %s31, 0
    loop: start=0, step=1, limit=4
    $region2: #{tpu_custom_call.1} parent=1 // loop_pre_header
      _
    $region3: #{tpu_custom_call.1} parent=1 // loop_header
      %s34 = sphi 0, %s38
      %p35 = scmp.ge.s32.totalorder %s34, 4
      %s41 = sphi 0, %s60
      %s42 = sphi 0, %s56
      %s43 = sphi 0, %s52
      %s44 = sphi 0, %s41
      %s45 = sphi 0, %s42
      %s46 = sphi 0, %s43
      %s47 = sphi 0, %s44
      %s48 = sphi 0, %s45
      %s49 = sphi 0, %s46
      %s65 = sphi 0, %s67
      %s68 = sphi 0, %s65
      %s69 = sphi 0, %s68
      %s85 = sphi 0, %s69
      %s93 = sphi 0, %s95
      %s96 = sphi 0, %s93
      %s97 = sphi 0, %s96
      %s113 = sphi 0, %s97
      %s141 = sphi 0, %s143
      %s144 = sphi 0, %s141
      %s145 = sphi 0, %s144
      %s161 = sphi 0, %s145
      %s189 = sphi 0, %s191
      %s192 = sphi 0, %s189
      %s193 = sphi 0, %s192
      %s209 = sphi 0, %s193
      %s217 = sphi 0, %s219
      %s220 = sphi 0, %s217
      %s221 = sphi 0, %s220
      %s237 = sphi 0, %s221
    $region4: #{tpu_custom_call.1} parent=1 // loop_header_branch
      %37 = sbr.rel (%p35) target = $region8
    $region5: #{tpu_custom_call.1} parent=1 // loop_body
      %s39 = ssub.s32 %s34, 1
      %s40 = ssub.s32 %s34, 2
      %s50 = sadd.s32 1, %s43
      %p51 = scmp.ge.s32.totalorder %s50, 1
      %s52 = scalar_select %p51, 0, %s50
      %s53 = sadd.s32 1, %s42
      %s54 = scalar_select %p51, %s53, %s42
      %p55 = scmp.ge.s32.totalorder %s54, 1
      %s56 = scalar_select %p55, 0, %s54
      %s57 = sadd.s32 1, %s41
      %s58 = scalar_select %p55, %s57, %s41
      %p59 = scmp.ge.s32.totalorder %s58, 2
      %s60 = scalar_select %p59, 0, %s58
      %s61 = ssub.s32 %s41, %s60
      %s62 = ssub.s32 %s42, %s56
      %s63 = sor.u32 %s61, %s62
      %p64 = scmp.eq.s32.totalorder %s63, 0
      %s66 = sadd.s32 %s65, 1
      %s67 = scalar_select %p64, %s65, %s66
      %p70 = pneg %p64
      %p71 = scmp.eq.s32.totalorder %s34, 1
      %p72 = por %p70, %p71
      %p73 = scmp.ne.s32.totalorder %s65, %s68
      %p74 = scmp.eq.s32.totalorder %s34, 0
      %p75 = por %p73, %p74
      %p76 = scmp.ne.s32.totalorder %s65, %s68
      %p77 = scmp.eq.s32.totalorder %s39, 1
      %p78 = por %p76, %p77
      %p79 = scmp.ne.s32.totalorder %s68, %s69
      %p80 = scmp.eq.s32.totalorder %s39, 0
      %p81 = por %p79, %p80
      %p82 = scmp.ne.s32.totalorder %s68, %s69
      %p83 = scmp.eq.s32.totalorder %s40, 1
      %p84 = por %p82, %p83
      %p86 = scmp.ne.s32.totalorder %s69, %s85
      %p87 = scmp.eq.s32.totalorder %s40, 0
      %p88 = por %p86, %p87
      %s89 = ssub.s32 %s41, %s60
      %s90 = ssub.s32 %s42, %s56
      %s91 = sor.u32 %s89, %s90
      %p92 = scmp.eq.s32.totalorder %s91, 0
      %s94 = sadd.s32 %s93, 1
      %s95 = scalar_select %p92, %s93, %s94
      %p98 = pneg %p92
      %p99 = scmp.eq.s32.totalorder %s34, 1
      %p100 = por %p98, %p99
      %p101 = scmp.ne.s32.totalorder %s93, %s96
      %p102 = scmp.eq.s32.totalorder %s34, 0
      %p103 = por %p101, %p102
      %p104 = scmp.ne.s32.totalorder %s93, %s96
      %p105 = scmp.eq.s32.totalorder %s39, 1
      %p106 = por %p104, %p105
      %p107 = scmp.ne.s32.totalorder %s96, %s97
      %p108 = scmp.eq.s32.totalorder %s39, 0
      %p109 = por %p107, %p108
      %p110 = scmp.ne.s32.totalorder %s96, %s97
      %p111 = scmp.eq.s32.totalorder %s40, 1
      %p112 = por %p110, %p111
      %p114 = scmp.ne.s32.totalorder %s97, %s113
      %p115 = scmp.eq.s32.totalorder %s40, 0
      %p116 = por %p114, %p115
      %s117 = sshra.s32 %s42, 7
      %s118 = sand.u32 %s42, 127
      %s119 = sadd.s32 %s117, %s41
      %s120 = smul.u32 %s119, 128
      %s121 = sshra.s32 %s42, 7
      %s122 = sand.u32 %s42, 127
      %s123 = sadd.s32 %s120, %s122
      %s124 = sld [smem:[#allocation9 + %s123]]
      %p125 = scmp.lt.s32.totalorder %s43, %s124
      %s126 = scalar_select %p125, %s43, %s124
      %s127 = sshra.s32 %s56, 7
      %s128 = sand.u32 %s56, 127
      %s129 = sadd.s32 %s127, %s60
      %s130 = smul.u32 %s129, 128
      %s131 = sshra.s32 %s56, 7
      %s132 = sand.u32 %s56, 127
      %s133 = sadd.s32 %s130, %s132
      %s134 = sld [smem:[#allocation9 + %s133]]
      %p135 = scmp.lt.s32.totalorder %s52, %s134
      %s136 = scalar_select %p135, %s52, %s134
      %s137 = ssub.s32 %s41, %s60
      %s138 = ssub.s32 %s126, %s136
      %s139 = sor.u32 %s137, %s138
      %p140 = scmp.eq.s32.totalorder %s139, 0
      %s142 = sadd.s32 %s141, 1
      %s143 = scalar_select %p140, %s141, %s142
      %p146 = pneg %p140
      %p147 = scmp.eq.s32.totalorder %s34, 1
      %p148 = por %p146, %p147
      %p149 = scmp.ne.s32.totalorder %s141, %s144
      %p150 = scmp.eq.s32.totalorder %s34, 0
      %p151 = por %p149, %p150
      %p152 = scmp.ne.s32.totalorder %s141, %s144
      %p153 = scmp.eq.s32.totalorder %s39, 1
      %p154 = por %p152, %p153
      %p155 = scmp.ne.s32.totalorder %s144, %s145
      %p156 = scmp.eq.s32.totalorder %s39, 0
      %p157 = por %p155, %p156
      %p158 = scmp.ne.s32.totalorder %s144, %s145
      %p159 = scmp.eq.s32.totalorder %s40, 1
      %p160 = por %p158, %p159
      %p162 = scmp.ne.s32.totalorder %s145, %s161
      %p163 = scmp.eq.s32.totalorder %s40, 0
      %p164 = por %p162, %p163
      %s165 = sshra.s32 %s42, 7
      %s166 = sand.u32 %s42, 127
      %s167 = sadd.s32 %s165, %s41
      %s168 = smul.u32 %s167, 128
      %s169 = sshra.s32 %s42, 7
      %s170 = sand.u32 %s42, 127
      %s171 = sadd.s32 %s168, %s170
      %s172 = sld [smem:[#allocation9 + %s171]]
      %p173 = scmp.lt.s32.totalorder %s43, %s172
      %s174 = scalar_select %p173, %s43, %s172
      %s175 = sshra.s32 %s56, 7
      %s176 = sand.u32 %s56, 127
      %s177 = sadd.s32 %s175, %s60
      %s178 = smul.u32 %s177, 128
      %s179 = sshra.s32 %s56, 7
      %s180 = sand.u32 %s56, 127
      %s181 = sadd.s32 %s178, %s180
      %s182 = sld [smem:[#allocation9 + %s181]]
      %p183 = scmp.lt.s32.totalorder %s52, %s182
      %s184 = scalar_select %p183, %s52, %s182
      %s185 = ssub.s32 %s41, %s60
      %s186 = ssub.s32 %s174, %s184
      %s187 = sor.u32 %s185, %s186
      %p188 = scmp.eq.s32.totalorder %s187, 0
      %s190 = sadd.s32 %s189, 1
      %s191 = scalar_select %p188, %s189, %s190
      %p194 = pneg %p188
      %p195 = scmp.eq.s32.totalorder %s34, 1
      %p196 = por %p194, %p195
      %p197 = scmp.ne.s32.totalorder %s189, %s192
      %p198 = scmp.eq.s32.totalorder %s34, 0
      %p199 = por %p197, %p198
      %p200 = scmp.ne.s32.totalorder %s189, %s192
      %p201 = scmp.eq.s32.totalorder %s39, 1
      %p202 = por %p200, %p201
      %p203 = scmp.ne.s32.totalorder %s192, %s193
      %p204 = scmp.eq.s32.totalorder %s39, 0
      %p205 = por %p203, %p204
      %p206 = scmp.ne.s32.totalorder %s192, %s193
      %p207 = scmp.eq.s32.totalorder %s40, 1
      %p208 = por %p206, %p207
      %p210 = scmp.ne.s32.totalorder %s193, %s209
      %p211 = scmp.eq.s32.totalorder %s40, 0
      %p212 = por %p210, %p211
      %s213 = ssub.s32 %s41, %s60
      %s214 = ssub.s32 %s42, %s56
      %s215 = sor.u32 %s213, %s214
      %p216 = scmp.eq.s32.totalorder %s215, 0
      %s218 = sadd.s32 %s217, 1
      %s219 = scalar_select %p216, %s217, %s218
      %p222 = pneg %p216
      %p223 = scmp.eq.s32.totalorder %s34, 1
      %p224 = por %p222, %p223
      %p225 = scmp.ne.s32.totalorder %s217, %s220
      %p226 = scmp.eq.s32.totalorder %s34, 0
      %p227 = por %p225, %p226
      %p228 = scmp.ne.s32.totalorder %s217, %s220
      %p229 = scmp.eq.s32.totalorder %s39, 1
      %p230 = por %p228, %p229
      %p231 = scmp.ne.s32.totalorder %s220, %s221
      %p232 = scmp.eq.s32.totalorder %s39, 0
      %p233 = por %p231, %p232
      %p234 = scmp.ne.s32.totalorder %s220, %s221
      %p235 = scmp.eq.s32.totalorder %s40, 1
      %p236 = por %p234, %p235
      %p238 = scmp.ne.s32.totalorder %s221, %s237
      %p239 = scmp.eq.s32.totalorder %s40, 0
      %p240 = por %p238, %p239
      %p241 = scmp.le.s32.totalorder 1, %s34
      %p242 = scmp.lt.s32.totalorder %s34, 3
      %p243 = pnand %p241, %p242
      %p244 = pneg %p243
      // Predicated region
      $region9: #{tpu_custom_call.1} parent=5 // pred_check
        _
      $region10: #{tpu_custom_call.1} parent=5 // pred_check_branch
        %246 = sbr.rel (%p243) target = $region12
      $region11: #{tpu_custom_call.1} parent=5 // pred_region
        %s247 = ssub.s32 %s34, 1
      $region12: #{tpu_custom_call.1} parent=5 // pred_fallthru
        _
      %p248 = scmp.lt.s32.totalorder %s34, 2
      // Predicated region
      $region13: #{tpu_custom_call.1} parent=5 // pred_check
        %p249 = pneg %p248
      $region14: #{tpu_custom_call.1} parent=5 // pred_check_branch
        %251 = sbr.rel (%p249) target = $region16
      $region15: #{tpu_custom_call.1} parent=5 // pred_region
        // Predicated region
        $region17: #{tpu_custom_call.1} parent=15 // pred_check
          %p252 = pneg %p75
        $region18: #{tpu_custom_call.1} parent=15 // pred_check_branch
          %254 = sbr.rel (%p252) target = $region20
        $region19: #{tpu_custom_call.1} parent=15 // pred_region
          %s255 = smul.u32 2, %s42
          %p256 = scmp.lt.s32.totalorder %s41, 1
          %s257 = scalar_select %p256, %s41, 1
          %p258 = scmp.lt.s32.totalorder %s255, 1
          %s259 = scalar_select %p258, %s255, 1
          %s260 = smul.addr %s257, 2
          %s261 = sadd.s32 %s259, %s260
          %s262 = smul.addr %s261, 8
          %s263 = scalar_lea.vmem %s3, %s262
          %s264 = smul.u32 2, %s42
        $region20: #{tpu_custom_call.1} parent=15 // pred_fallthru
          _
        // Predicated region
        $region21: #{tpu_custom_call.1} parent=15 // pred_check
          %p265 = pneg %p103
        $region22: #{tpu_custom_call.1} parent=15 // pred_check_branch
          %267 = sbr.rel (%p265) target = $region24
        $region23: #{tpu_custom_call.1} parent=15 // pred_region
          %s268 = smul.u32 2, %s42
          %p269 = scmp.lt.s32.totalorder %s41, 1
          %s270 = scalar_select %p269, %s41, 1
          %p271 = scmp.lt.s32.totalorder %s268, 1
          %s272 = scalar_select %p271, %s268, 1
          %s273 = smul.addr %s270, 2
          %s274 = sadd.s32 %s272, %s273
          %s275 = smul.addr %s274, 8
          %s276 = scalar_lea.vmem %s4, %s275
          %s277 = smul.u32 2, %s42
        $region24: #{tpu_custom_call.1} parent=15 // pred_fallthru
          _
        // Predicated region
        $region25: #{tpu_custom_call.1} parent=15 // pred_check
          %p278 = pneg %p151
        $region26: #{tpu_custom_call.1} parent=15 // pred_check_branch
          %280 = sbr.rel (%p278) target = $region28
        $region27: #{tpu_custom_call.1} parent=15 // pred_region
          %s281 = sshra.s32 %s42, 7
          %s282 = sand.u32 %s42, 127
          %s283 = sadd.s32 %s281, %s41
          %s284 = smul.u32 %s283, 128
          %s285 = sshra.s32 %s42, 7
          %s286 = sand.u32 %s42, 127
          %s287 = sadd.s32 %s284, %s286
          %s288 = sld [smem:[#allocation9 + %s287]]
          %p289 = scmp.lt.s32.totalorder %s43, %s288
          %s290 = scalar_select %p289, %s43, %s288
          %s291 = smul.u32 16, %s290
          %p292 = scmp.lt.s32.totalorder %s41, 1
          %s293 = scalar_select %p292, %s41, 1
          %p294 = scmp.lt.s32.totalorder %s291, 15
          %s295 = scalar_select %p294, %s291, 15
          %s296 = smul.addr %s293, 16
          %s297 = sadd.s32 %s295, %s296
          %s298 = smul.addr %s297, 8
          %s299 = scalar_lea.vmem %s5, %s298
          %s300 = sshra.s32 %s42, 7
          %s301 = sand.u32 %s42, 127
          %s302 = sadd.s32 %s300, %s41
          %s303 = smul.u32 %s302, 128
          %s304 = sshra.s32 %s42, 7
          %s305 = sand.u32 %s42, 127
          %s306 = sadd.s32 %s303, %s305
          %s307 = sld [smem:[#allocation9 + %s306]]
          %p308 = scmp.lt.s32.totalorder %s43, %s307
          %s309 = scalar_select %p308, %s43, %s307
          %s310 = smul.u32 16, %s309
        $region28: #{tpu_custom_call.1} parent=15 // pred_fallthru
          _
        // Predicated region
        $region29: #{tpu_custom_call.1} parent=15 // pred_check
          %p311 = pneg %p199
        $region30: #{tpu_custom_call.1} parent=15 // pred_check_branch
          %313 = sbr.rel (%p311) target = $region32
        $region31: #{tpu_custom_call.1} parent=15 // pred_region
          %s314 = sshra.s32 %s42, 7
          %s315 = sand.u32 %s42, 127
          %s316 = sadd.s32 %s314, %s41
          %s317 = smul.u32 %s316, 128
          %s318 = sshra.s32 %s42, 7
          %s319 = sand.u32 %s42, 127
          %s320 = sadd.s32 %s317, %s319
          %s321 = sld [smem:[#allocation9 + %s320]]
          %p322 = scmp.lt.s32.totalorder %s43, %s321
          %s323 = scalar_select %p322, %s43, %s321
          %s324 = smul.u32 16, %s323
          %p325 = scmp.lt.s32.totalorder %s41, 1
          %s326 = scalar_select %p325, %s41, 1
          %p327 = scmp.lt.s32.totalorder %s324, 15
          %s328 = scalar_select %p327, %s324, 15
          %s329 = smul.addr %s326, 16
          %s330 = sadd.s32 %s328, %s329
          %s331 = smul.addr %s330, 8
          %s332 = scalar_lea.vmem %s6, %s331
          %s333 = sshra.s32 %s42, 7
          %s334 = sand.u32 %s42, 127
          %s335 = sadd.s32 %s333, %s41
          %s336 = smul.u32 %s335, 128
          %s337 = sshra.s32 %s42, 7
          %s338 = sand.u32 %s42, 127
          %s339 = sadd.s32 %s336, %s338
          %s340 = sld [smem:[#allocation9 + %s339]]
          %p341 = scmp.lt.s32.totalorder %s43, %s340
          %s342 = scalar_select %p341, %s43, %s340
          %s343 = smul.u32 16, %s342
        $region32: #{tpu_custom_call.1} parent=15 // pred_fallthru
          _
      $region16: #{tpu_custom_call.1} parent=5 // pred_fallthru
        _
      %p344 = scmp.le.s32.totalorder 1, %s34
      %p345 = scmp.lt.s32.totalorder %s34, 3
      %p346 = pnand %p344, %p345
      %p347 = pneg %p346
      // Predicated region
      $region33: #{tpu_custom_call.1} parent=5 // pred_check
        _
      $region34: #{tpu_custom_call.1} parent=5 // pred_check_branch
        %349 = sbr.rel (%p346) target = $region36
      $region35: #{tpu_custom_call.1} parent=5 // pred_region
        %s350 = ssub.s32 %s34, 1
        %s351 = smul.u32 2, %s45
        %p352 = scmp.lt.s32.totalorder %s44, 1
        %s353 = scalar_select %p352, %s44, 1
        %p354 = scmp.lt.s32.totalorder %s351, 1
        %s355 = scalar_select %p354, %s351, 1
        %s356 = smul.addr %s353, 2
        %s357 = sadd.s32 %s355, %s356
        %s358 = smul.addr %s357, 8
        %s359 = scalar_lea.vmem %s3, %s358
        %p360 = pneg %p81
        %p361 = pneg %p78
        %s362 = smul.u32 2, %s45
        %p363 = scmp.lt.s32.totalorder %s44, 1
        %s364 = scalar_select %p363, %s44, 1
        %p365 = scmp.lt.s32.totalorder %s362, 1
        %s366 = scalar_select %p365, %s362, 1
        %s367 = smul.addr %s364, 2
        %s368 = sadd.s32 %s366, %s367
        %s369 = smul.addr %s368, 8
        %s370 = scalar_lea.vmem %s4, %s369
        %p371 = pneg %p109
        %p372 = pneg %p106
        %s373 = sshra.s32 %s45, 7
        %s374 = sand.u32 %s45, 127
        %s375 = sadd.s32 %s373, %s44
        %s376 = smul.u32 %s375, 128
        %s377 = sshra.s32 %s45, 7
        %s378 = sand.u32 %s45, 127
        %s379 = sadd.s32 %s376, %s378
        %s380 = sld [smem:[#allocation9 + %s379]]
        %p381 = scmp.lt.s32.totalorder %s46, %s380
        %s382 = scalar_select %p381, %s46, %s380
        %s383 = smul.u32 16, %s382
        %p384 = scmp.lt.s32.totalorder %s44, 1
        %s385 = scalar_select %p384, %s44, 1
        %p386 = scmp.lt.s32.totalorder %s383, 15
        %s387 = scalar_select %p386, %s383, 15
        %s388 = smul.addr %s385, 16
        %s389 = sadd.s32 %s387, %s388
        %s390 = smul.addr %s389, 8
        %s391 = scalar_lea.vmem %s5, %s390
        %p392 = pneg %p157
        %p393 = pneg %p154
        %s394 = sshra.s32 %s45, 7
        %s395 = sand.u32 %s45, 127
        %s396 = sadd.s32 %s394, %s44
        %s397 = smul.u32 %s396, 128
        %s398 = sshra.s32 %s45, 7
        %s399 = sand.u32 %s45, 127
        %s400 = sadd.s32 %s397, %s399
        %s401 = sld [smem:[#allocation9 + %s400]]
        %p402 = scmp.lt.s32.totalorder %s46, %s401
        %s403 = scalar_select %p402, %s46, %s401
        %s404 = smul.u32 16, %s403
        %p405 = scmp.lt.s32.totalorder %s44, 1
        %s406 = scalar_select %p405, %s44, 1
        %p407 = scmp.lt.s32.totalorder %s404, 15
        %s408 = scalar_select %p407, %s404, 15
        %s409 = smul.addr %s406, 16
        %s410 = sadd.s32 %s408, %s409
        %s411 = smul.addr %s410, 8
        %s412 = scalar_lea.vmem %s6, %s411
        %p413 = pneg %p205
        %p414 = pneg %p202
        %p415 = pneg %p233
        %p416 = pneg %p230
        %s417 = sand.u32 %s220, 1
        %s418 = scalar_lea.sflag [#allocation11], %s417
        %s419 = sand.u32 %s220, 1
        %s420 = smul.addr %s419, 16
        %s421 = scalar_lea.vmem [#allocation10], %s420
        %s422 = smul.u32 2, %s45
        %p423 = scmp.lt.s32.totalorder %s44, 1
        %s424 = scalar_select %p423, %s44, 1
        %p425 = scmp.lt.s32.totalorder %s422, 1
        %s426 = scalar_select %p425, %s422, 1
        %s427 = smul.addr %s424, 2
        %s428 = sadd.s32 %s426, %s427
        %s429 = smul.addr %s428, 8
        %s430 = scalar_lea.vmem %s3, %s429
        %s431 = smul.u32 2, %s45
        %s432 = smul.u32 2, %s45
        %p433 = scmp.lt.s32.totalorder %s44, 1
        %s434 = scalar_select %p433, %s44, 1
        %p435 = scmp.lt.s32.totalorder %s432, 1
        %s436 = scalar_select %p435, %s432, 1
        %s437 = smul.addr %s434, 2
        %s438 = sadd.s32 %s436, %s437
        %s439 = smul.addr %s438, 8
        %s440 = scalar_lea.vmem %s4, %s439
        %s441 = smul.u32 2, %s45
        %s442 = sshra.s32 %s45, 7
        %s443 = sand.u32 %s45, 127
        %s444 = sadd.s32 %s442, %s44
        %s445 = smul.u32 %s444, 128
        %s446 = sshra.s32 %s45, 7
        %s447 = sand.u32 %s45, 127
        %s448 = sadd.s32 %s445, %s447
        %s449 = sld [smem:[#allocation9 + %s448]]
        %p450 = scmp.lt.s32.totalorder %s46, %s449
        %s451 = scalar_select %p450, %s46, %s449
        %s452 = smul.u32 16, %s451
        %p453 = scmp.lt.s32.totalorder %s44, 1
        %s454 = scalar_select %p453, %s44, 1
        %p455 = scmp.lt.s32.totalorder %s452, 15
        %s456 = scalar_select %p455, %s452, 15
        %s457 = smul.addr %s454, 16
        %s458 = sadd.s32 %s456, %s457
        %s459 = smul.addr %s458, 8
        %s460 = scalar_lea.vmem %s5, %s459
        %s461 = sshra.s32 %s45, 7
        %s462 = sand.u32 %s45, 127
        %s463 = sadd.s32 %s461, %s44
        %s464 = smul.u32 %s463, 128
        %s465 = sshra.s32 %s45, 7
        %s466 = sand.u32 %s45, 127
        %s467 = sadd.s32 %s464, %s466
        %s468 = sld [smem:[#allocation9 + %s467]]
        %p469 = scmp.lt.s32.totalorder %s46, %s468
        %s470 = scalar_select %p469, %s46, %s468
        %s471 = smul.u32 16, %s470
        %s472 = sshra.s32 %s45, 7
        %s473 = sand.u32 %s45, 127
        %s474 = sadd.s32 %s472, %s44
        %s475 = smul.u32 %s474, 128
        %s476 = sshra.s32 %s45, 7
        %s477 = sand.u32 %s45, 127
        %s478 = sadd.s32 %s475, %s477
        %s479 = sld [smem:[#allocation9 + %s478]]
        %p480 = scmp.lt.s32.totalorder %s46, %s479
        %s481 = scalar_select %p480, %s46, %s479
        %s482 = smul.u32 16, %s481
        %p483 = scmp.lt.s32.totalorder %s44, 1
        %s484 = scalar_select %p483, %s44, 1
        %p485 = scmp.lt.s32.totalorder %s482, 15
        %s486 = scalar_select %p485, %s482, 15
        %s487 = smul.addr %s484, 16
        %s488 = sadd.s32 %s486, %s487
        %s489 = smul.addr %s488, 8
        %s490 = scalar_lea.vmem %s6, %s489
        %s491 = sshra.s32 %s45, 7
        %s492 = sand.u32 %s45, 127
        %s493 = sadd.s32 %s491, %s44
        %s494 = smul.u32 %s493, 128
        %s495 = sshra.s32 %s45, 7
        %s496 = sand.u32 %s45, 127
        %s497 = sadd.s32 %s494, %s496
        %s498 = sld [smem:[#allocation9 + %s497]]
        %p499 = scmp.lt.s32.totalorder %s46, %s498
        %s500 = scalar_select %p499, %s46, %s498
        %s501 = smul.u32 16, %s500
        %s502 = smul.u32 2, %s45
        %s503 = smul.u32 %s46, 128
        %p504 = scmp.eq.s32.totalorder %s46, 0
        // Predicated region
        $region37: #{tpu_custom_call.1} parent=35 // pred_check
          %p505 = pneg %p504
        $region38: #{tpu_custom_call.1} parent=35 // pred_check_branch
          %507 = sbr.rel (%p505) target = $region40
        $region39: #{tpu_custom_call.1} parent=35 // pred_region
          %vm508 = vcmask 7168
          %509 = vst.msk [vmem:[#allocation2] sm:$0xff] %vm508, -1e+30
          %510 = vst.msk [vmem:[#allocation2 + $0x8] sm:$0xff] %vm508, -1e+30
          %511 = vst.msk [vmem:[#allocation3] sm:$0xff] %vm508, 0.0
          %512 = vst.msk [vmem:[#allocation3 + $0x8] sm:$0xff] %vm508, 0.0
          %513 = vst [vmem:[#allocation4] sm:$0xff] 0.0
          %514 = vst [vmem:[#allocation4 + $0x8] sm:$0xff] 0.0
          %v515 = vld [vmem:[%s440] sm:$0xff]
          %v516 = vld [vmem:[%s440 + $0x8] sm:$0xff]
          %v517 = vmul.f32 %v515, 0.17677669
          %v518 = vmul.f32 %v516, 0.17677669
          %vm519 = vcmask 261120
          %520 = vst.msk [vmem:[#allocation5] sm:$0xff] %vm519, %v517
          %521 = vst.msk [vmem:[#allocation5 + $0x8] sm:$0xff] %vm519, %v518
        $region40: #{tpu_custom_call.1} parent=35 // pred_fallthru
          _
        %s522 = sshra.s32 %s45, 7
        %s523 = sand.u32 %s45, 127
        %s524 = sadd.s32 %s522, %s44
        %s525 = smul.u32 %s524, 128
        %s526 = sshra.s32 %s45, 7
        %s527 = sand.u32 %s45, 127
        %s528 = sadd.s32 %s525, %s527
        %s529 = sld [smem:[#allocation8 + %s528]]
        %s530 = sld [smem:[#allocation7 + %s528]]
        %p531 = scmp.lt.s32.totalorder %s503, %s529
        // Predicated region
        $region41: #{tpu_custom_call.1} parent=35 // pred_check
          %p532 = pneg %p531
        $region42: #{tpu_custom_call.1} parent=35 // pred_check_branch
          %534 = sbr.rel (%p532) target = $region44
        $region43: #{tpu_custom_call.1} parent=35 // pred_region
          %v535 = vld [vmem:[#allocation5] sm:$0xff]
          %v536 = vld [vmem:[#allocation5 + $0x8] sm:$0xff]
          %v537 = vld [vmem:[%s460] sm:$0xff]
          %v538 = vld [vmem:[%s460 + $0x8] sm:$0xff]
          %v539 = vld [vmem:[%s460 + $0x10] sm:$0xff]
          %v540 = vld [vmem:[%s460 + $0x18] sm:$0xff]
          %v541 = vld [vmem:[%s460 + $0x20] sm:$0xff]
          %v542 = vld [vmem:[%s460 + $0x28] sm:$0xff]
          %v543 = vld [vmem:[%s460 + $0x30] sm:$0xff]
          %v544 = vld [vmem:[%s460 + $0x38] sm:$0xff]
          %v545 = vld [vmem:[%s460 + $0x40] sm:$0xff]
          %v546 = vld [vmem:[%s460 + $0x48] sm:$0xff]
          %v547 = vld [vmem:[%s460 + $0x50] sm:$0xff]
          %v548 = vld [vmem:[%s460 + $0x58] sm:$0xff]
          %v549 = vld [vmem:[%s460 + $0x60] sm:$0xff]
          %v550 = vld [vmem:[%s460 + $0x68] sm:$0xff]
          %v551 = vld [vmem:[%s460 + $0x70] sm:$0xff]
          %v552 = vld [vmem:[%s460 + $0x78] sm:$0xff]
          %vm553 = vcmask 261120
          %v555 = vsel %vm553, %v535, 0
          %v558 = vsel %vm553, %v536, 0
          %v561 = vsel %vm553, %v537, 0
          %v564 = vsel %vm553, %v538, 0
          %v567 = vsel %vm553, %v539, 0
          %v570 = vsel %vm553, %v540, 0
          %v573 = vsel %vm553, %v541, 0
          %v576 = vsel %vm553, %v542, 0
          %v579 = vsel %vm553, %v543, 0
          %v582 = vsel %vm553, %v544, 0
          %v585 = vsel %vm553, %v545, 0
          %v588 = vsel %vm553, %v546, 0
          %v591 = vsel %vm553, %v547, 0
          %v594 = vsel %vm553, %v548, 0
          %v597 = vsel %vm553, %v549, 0
          %v600 = vsel %vm553, %v550, 0
          %v603 = vsel %vm553, %v551, 0
          %v606 = vsel %vm553, %v552, 0
          %608 = vmatpush.xpose.msra.mxu0 %v606
          %609 = vmatpush.xpose.msra.mxu0 %v603
          %610 = vmatpush.xpose.msra.mxu0 %v600
          %611 = vmatpush.xpose.msra.mxu0 %v597
          %612 = vmatpush.xpose.msra.mxu0 %v594
          %613 = vmatpush.xpose.msra.mxu0 %v591
          %614 = vmatpush.xpose.msra.mxu0 %v588
          %615 = vmatpush.xpose.msra.mxu0 %v585
          %616 = vmatpush.xpose.msra.mxu0 %v582
          %617 = vmatpush.xpose.msra.mxu0 %v579
          %618 = vmatpush.xpose.msra.mxu0 %v576
          %619 = vmatpush.xpose.msra.mxu0 %v573
          %620 = vmatpush.xpose.msra.mxu0 %v570
          %621 = vmatpush.xpose.msra.mxu0 %v567
          %622 = vmatpush.xpose.msra.mxu0 %v564
          %623 = vmatpush.xpose.msra.mxu0 %v561
          %624 = vmatmul.f32.gmra.mxu0 %v555
          %v625 = vpop.f32.mrf.mxu0
          %v626 = vadd.f32 0.0, %v625
          %627 = vmatmul.f32.gmra.mxu0 %v558
          %v628 = vpop.f32.mrf.mxu0
          %v629 = vadd.f32 0.0, %v628
          %630 = vdwg.mxu0
          %s631 = sadd.s32 %s503, 128
          %p632 = scmp.le.s32.totalorder %s631, %s530
          // Predicated region
          $region45: #{tpu_custom_call.1} parent=43 // pred_check
            %p633 = pneg %p632
          $region46: #{tpu_custom_call.1} parent=43 // pred_check_branch
            %635 = sbr.rel (%p633) target = $region48
          $region47: #{tpu_custom_call.1} parent=43 // pred_region
            %v636 = vld [vmem:[#allocation2] sm:$0xff]
            %v637 = vld [vmem:[#allocation2 + $0x8] sm:$0xff]
            %638 = vmax.xlane.f32.xlu0 %v626
            %v639 = vpop.xlane.xlu0 %638
            %640 = vmax.xlane.f32.xlu0 %v629
            %v641 = vpop.xlane.xlu0 %640
            %v642 = vmax.f32 %v636, %v639
            %v643 = vmax.f32 %v637, %v641
            %v644 = vsub.f32 %v636, %v642
            %v645 = vsub.f32 %v637, %v643
            %v646 = vmul.f32 %v644, 1.442695
            %v647 = vpow.pop %v646
            %v648 = vmul.f32 %v645, 1.442695
            %v649 = vpow.pop %v648
            %651 = vset.pattern.permute.xlu0 0
            %652 = vperm.xlu0 %651, %v642
            %v653 = vpop.permute.xlu0 %652
            %656 = vset.pattern.permute.xlu0 0
            %657 = vperm.xlu0 %656, %v643
            %v658 = vpop.permute.xlu0 %657
            %v660 = vsub.f32 %v626, %v653
            %v661 = vsub.f32 %v629, %v658
            %v662 = vmul.f32 %v660, 1.442695
            %v663 = vpow.pop %v662
            %v664 = vmul.f32 %v661, 1.442695
            %v665 = vpow.pop %v664
            %v666 = vld [vmem:[#allocation3] sm:$0xff]
            %v667 = vld [vmem:[#allocation3 + $0x8] sm:$0xff]
            %v668 = vmul.f32 %v647, %v666
            %v669 = vmul.f32 %v649, %v667
            %670 = vadd.xlane.f32.xlu0 %v663
            %v671 = vpop.xlane.xlu0 %670
            %672 = vadd.xlane.f32.xlu0 %v665
            %v673 = vpop.xlane.xlu0 %672
            %v674 = vadd.f32 %v668, %v671
            %v675 = vadd.f32 %v669, %v673
            %vm676 = vcmask 7168
            %677 = vst.msk [vmem:[#allocation3] sm:$0xff] %vm676, %v674
            %678 = vst.msk [vmem:[#allocation3 + $0x8] sm:$0xff] %vm676, %v675
            %v679 = vld [vmem:[#allocation4] sm:$0xff]
            %v680 = vld [vmem:[#allocation4 + $0x8] sm:$0xff]
            %682 = vset.pattern.permute.xlu0 0
            %683 = vperm.xlu0 %682, %v647
            %v684 = vpop.permute.xlu0 %683
            %687 = vset.pattern.permute.xlu0 0
            %688 = vperm.xlu0 %687, %v649
            %v689 = vpop.permute.xlu0 %688
            %v691 = vmul.f32 %v684, %v679
            %v692 = vmul.f32 %v689, %v680
            %v693 = vld [vmem:[%s490] sm:$0xff]
            %v694 = vld [vmem:[%s490 + $0x8] sm:$0xff]
            %v695 = vld [vmem:[%s490 + $0x10] sm:$0xff]
            %v696 = vld [vmem:[%s490 + $0x18] sm:$0xff]
            %v697 = vld [vmem:[%s490 + $0x20] sm:$0xff]
            %v698 = vld [vmem:[%s490 + $0x28] sm:$0xff]
            %v699 = vld [vmem:[%s490 + $0x30] sm:$0xff]
            %v700 = vld [vmem:[%s490 + $0x38] sm:$0xff]
            %v701 = vld [vmem:[%s490 + $0x40] sm:$0xff]
            %v702 = vld [vmem:[%s490 + $0x48] sm:$0xff]
            %v703 = vld [vmem:[%s490 + $0x50] sm:$0xff]
            %v704 = vld [vmem:[%s490 + $0x58] sm:$0xff]
            %v705 = vld [vmem:[%s490 + $0x60] sm:$0xff]
            %v706 = vld [vmem:[%s490 + $0x68] sm:$0xff]
            %v707 = vld [vmem:[%s490 + $0x70] sm:$0xff]
            %v708 = vld [vmem:[%s490 + $0x78] sm:$0xff]
            %709 = vmatpush.msra.mxu0 %v708
            %710 = vmatpush.msra.mxu0 %v707
            %711 = vmatpush.msra.mxu0 %v706
            %712 = vmatpush.msra.mxu0 %v705
            %713 = vmatpush.msra.mxu0 %v704
            %714 = vmatpush.msra.mxu0 %v703
            %715 = vmatpush.msra.mxu0 %v702
            %716 = vmatpush.msra.mxu0 %v701
            %717 = vmatpush.msra.mxu0 %v700
            %718 = vmatpush.msra.mxu0 %v699
            %719 = vmatpush.msra.mxu0 %v698
            %720 = vmatpush.msra.mxu0 %v697
            %721 = vmatpush.msra.mxu0 %v696
            %722 = vmatpush.msra.mxu0 %v695
            %723 = vmatpush.msra.mxu0 %v694
            %724 = vmatpush.msra.mxu0 %v693
            %725 = vmatmul.f32.gmra.mxu0 %v663
            %v726 = vpop.f32.mrf.mxu0
            %v727 = vadd.f32 0.0, %v726
            %728 = vmatmul.f32.gmra.mxu0 %v665
            %v729 = vpop.f32.mrf.mxu0
            %v730 = vadd.f32 0.0, %v729
            %731 = vdwg.mxu0
            %v732 = vadd.f32 %v691, %v727
            %v733 = vadd.f32 %v692, %v730
            %734 = vst [vmem:[#allocation4] sm:$0xff] %v732
            %735 = vst [vmem:[#allocation4 + $0x8] sm:$0xff] %v733
            %736 = vst.msk [vmem:[#allocation2] sm:$0xff] %vm676, %v642
            %737 = vst.msk [vmem:[#allocation2 + $0x8] sm:$0xff] %vm676, %v643
          $region48: #{tpu_custom_call.1} parent=43 // pred_fallthru
            _
          %p738 = scmp.gt.s32.totalorder %s631, %s530
          // Predicated region
          $region49: #{tpu_custom_call.1} parent=43 // pred_check
            %p739 = pneg %p738
          $region50: #{tpu_custom_call.1} parent=43 // pred_check_branch
            %741 = sbr.rel (%p739) target = $region52
          $region51: #{tpu_custom_call.1} parent=43 // pred_region
            %v742 = vlaneseq
            %v743 = vand.u32 %v742, 127
            %v744 = vstv %s503
            %v745 = vadd.s32 %v743, %v744
            %v746 = vld [vmem:[%s430] sm:$0xff]
            %v747 = vld [vmem:[%s430 + $0x8] sm:$0xff]
            %748 = vset.pattern.permute.xlu0 0
            %749 = vperm.xlu0 %748, %v746
            %v750 = vpop.permute.xlu0 %749
            %751 = vset.pattern.permute.xlu0 0
            %752 = vperm.xlu0 %751, %v747
            %v753 = vpop.permute.xlu0 %752
            %vm754 = vcmp.lt.s32.totalorder %v745, %v750
            %vm755 = vcmp.lt.s32.totalorder %v745, %v753
            %v756 = vsel %vm754, %v626, -1000000.0
            %v757 = vsel %vm755, %v629, -1000000.0
            %v758 = vld [vmem:[#allocation2] sm:$0xff]
            %v759 = vld [vmem:[#allocation2 + $0x8] sm:$0xff]
            %760 = vmax.xlane.f32.xlu0 %v756
            %v761 = vpop.xlane.xlu0 %760
            %762 = vmax.xlane.f32.xlu0 %v757
            %v763 = vpop.xlane.xlu0 %762
            %v764 = vmax.f32 %v758, %v761
            %v765 = vmax.f32 %v759, %v763
            %v766 = vsub.f32 %v758, %v764
            %v767 = vsub.f32 %v759, %v765
            %v768 = vmul.f32 %v766, 1.442695
            %v769 = vpow.pop %v768
            %v770 = vmul.f32 %v767, 1.442695
            %v771 = vpow.pop %v770
            %773 = vset.pattern.permute.xlu0 0
            %774 = vperm.xlu0 %773, %v764
            %v775 = vpop.permute.xlu0 %774
            %778 = vset.pattern.permute.xlu0 0
            %779 = vperm.xlu0 %778, %v765
            %v780 = vpop.permute.xlu0 %779
            %v782 = vsub.f32 %v756, %v775
            %v783 = vsub.f32 %v757, %v780
            %v784 = vmul.f32 %v782, 1.442695
            %v785 = vpow.pop %v784
            %v786 = vmul.f32 %v783, 1.442695
            %v787 = vpow.pop %v786
            %v788 = vld [vmem:[#allocation3] sm:$0xff]
            %v789 = vld [vmem:[#allocation3 + $0x8] sm:$0xff]
            %v790 = vmul.f32 %v769, %v788
            %v791 = vmul.f32 %v771, %v789
            %792 = vadd.xlane.f32.xlu0 %v785
            %v793 = vpop.xlane.xlu0 %792
            %794 = vadd.xlane.f32.xlu0 %v787
            %v795 = vpop.xlane.xlu0 %794
            %v796 = vadd.f32 %v790, %v793
            %v797 = vadd.f32 %v791, %v795
            %vm798 = vcmask 7168
            %799 = vst.msk [vmem:[#allocation3] sm:$0xff] %vm798, %v796
            %800 = vst.msk [vmem:[#allocation3 + $0x8] sm:$0xff] %vm798, %v797
            %v801 = vld [vmem:[#allocation4] sm:$0xff]
            %v802 = vld [vmem:[#allocation4 + $0x8] sm:$0xff]
            %804 = vset.pattern.permute.xlu0 0
            %805 = vperm.xlu0 %804, %v769
            %v806 = vpop.permute.xlu0 %805
            %809 = vset.pattern.permute.xlu0 0
            %810 = vperm.xlu0 %809, %v771
            %v811 = vpop.permute.xlu0 %810
            %v813 = vmul.f32 %v806, %v801
            %v814 = vmul.f32 %v811, %v802
            %v815 = vld [vmem:[%s490] sm:$0xff]
            %v816 = vld [vmem:[%s490 + $0x8] sm:$0xff]
            %v817 = vld [vmem:[%s490 + $0x10] sm:$0xff]
            %v818 = vld [vmem:[%s490 + $0x18] sm:$0xff]
            %v819 = vld [vmem:[%s490 + $0x20] sm:$0xff]
            %v820 = vld [vmem:[%s490 + $0x28] sm:$0xff]
            %v821 = vld [vmem:[%s490 + $0x30] sm:$0xff]
            %v822 = vld [vmem:[%s490 + $0x38] sm:$0xff]
            %v823 = vld [vmem:[%s490 + $0x40] sm:$0xff]
            %v824 = vld [vmem:[%s490 + $0x48] sm:$0xff]
            %v825 = vld [vmem:[%s490 + $0x50] sm:$0xff]
            %v826 = vld [vmem:[%s490 + $0x58] sm:$0xff]
            %v827 = vld [vmem:[%s490 + $0x60] sm:$0xff]
            %v828 = vld [vmem:[%s490 + $0x68] sm:$0xff]
            %v829 = vld [vmem:[%s490 + $0x70] sm:$0xff]
            %v830 = vld [vmem:[%s490 + $0x78] sm:$0xff]
            %831 = vmatpush.msra.mxu0 %v830
            %832 = vmatpush.msra.mxu0 %v829
            %833 = vmatpush.msra.mxu0 %v828
            %834 = vmatpush.msra.mxu0 %v827
            %835 = vmatpush.msra.mxu0 %v826
            %836 = vmatpush.msra.mxu0 %v825
            %837 = vmatpush.msra.mxu0 %v824
            %838 = vmatpush.msra.mxu0 %v823
            %839 = vmatpush.msra.mxu0 %v822
            %840 = vmatpush.msra.mxu0 %v821
            %841 = vmatpush.msra.mxu0 %v820
            %842 = vmatpush.msra.mxu0 %v819
            %843 = vmatpush.msra.mxu0 %v818
            %844 = vmatpush.msra.mxu0 %v817
            %845 = vmatpush.msra.mxu0 %v816
            %846 = vmatpush.msra.mxu0 %v815
            %847 = vmatmul.f32.gmra.mxu0 %v785
            %v848 = vpop.f32.mrf.mxu0
            %v849 = vadd.f32 0.0, %v848
            %850 = vmatmul.f32.gmra.mxu0 %v787
            %v851 = vpop.f32.mrf.mxu0
            %v852 = vadd.f32 0.0, %v851
            %853 = vdwg.mxu0
            %v854 = vadd.f32 %v813, %v849
            %v855 = vadd.f32 %v814, %v852
            %856 = vst [vmem:[#allocation4] sm:$0xff] %v854
            %857 = vst [vmem:[#allocation4 + $0x8] sm:$0xff] %v855
            %858 = vst.msk [vmem:[#allocation2] sm:$0xff] %vm798, %v764
            %859 = vst.msk [vmem:[#allocation2 + $0x8] sm:$0xff] %vm798, %v765
          $region52: #{tpu_custom_call.1} parent=43 // pred_fallthru
            _
        $region44: #{tpu_custom_call.1} parent=35 // pred_fallthru
          _
        // Predicated region
        $region53: #{tpu_custom_call.1} parent=35 // pred_check
          %p860 = pneg %p504
        $region54: #{tpu_custom_call.1} parent=35 // pred_check_branch
          %862 = sbr.rel (%p860) target = $region56
        $region55: #{tpu_custom_call.1} parent=35 // pred_region
          %v863 = vld [vmem:[#allocation3] sm:$0xff]
          %v864 = vld [vmem:[#allocation3 + $0x8] sm:$0xff]
          %v865 = vmax.f32 %v863, 1e-30
          %v866 = vmax.f32 %v864, 1e-30
          %v867 = vld [vmem:[#allocation4] sm:$0xff]
          %v868 = vld [vmem:[#allocation4 + $0x8] sm:$0xff]
          %870 = vset.pattern.permute.xlu0 0
          %871 = vperm.xlu0 %870, %v865
          %v872 = vpop.permute.xlu0 %871
          %875 = vset.pattern.permute.xlu0 0
          %876 = vperm.xlu0 %875, %v866
          %v877 = vpop.permute.xlu0 %876
          %v879 = vrcp.pop %v872
          %v880 = vmul.f32 %v872, %v879
          %v881 = vsub.f32 1.0, %v880
          %v882 = vmul.f32 %v879, %v881
          %v883 = vadd.f32 %v879, %v882
          %vm884 = vweird.f32 %v872
          %vm885 = vweird.f32 %v879
          %vm886 = vmor %vm884, %vm885
          %v887 = vsel %vm886, %v879, %v883
          %v888 = vand.u32 2147483647, %v872
          %vm889 = vcmp.eq.f32.partialorder %v888, 8.507059e+37
          %v890 = vand.u32 %v872, 2147483648
          %v891 = vor.u32 1.1754944e-38, %v890
          %v892 = vsel %vm889, %v891, %v887
          %v893 = vmul.f32 %v867, %v892
          %v894 = vrcp.pop %v877
          %v895 = vmul.f32 %v877, %v894
          %v896 = vsub.f32 1.0, %v895
          %v897 = vmul.f32 %v894, %v896
          %v898 = vadd.f32 %v894, %v897
          %vm899 = vweird.f32 %v877
          %vm900 = vweird.f32 %v894
          %vm901 = vmor %vm899, %vm900
          %v902 = vsel %vm901, %v894, %v898
          %v903 = vand.u32 2147483647, %v877
          %vm904 = vcmp.eq.f32.partialorder %v903, 8.507059e+37
          %v905 = vand.u32 %v877, 2147483648
          %v906 = vor.u32 1.1754944e-38, %v905
          %v907 = vsel %vm904, %v906, %v902
          %v908 = vmul.f32 %v868, %v907
          %909 = vst [vmem:[%s421] sm:$0xff] %v893
          %910 = vst [vmem:[%s421 + $0x8] sm:$0xff] %v908
        $region56: #{tpu_custom_call.1} parent=35 // pred_fallthru
          _
        %s911 = sand.u32 %s220, 1
        %s912 = scalar_lea.sflag [#allocation11], %s911
        %s913 = sand.u32 %s220, 1
        %s914 = smul.addr %s913, 16
        %s915 = scalar_lea.vmem [#allocation10], %s914
        // Predicated region
        $region57: #{tpu_custom_call.1} parent=35 // pred_check
          %p916 = pneg %p230
        $region58: #{tpu_custom_call.1} parent=35 // pred_check_branch
          %918 = sbr.rel (%p916) target = $region60
        $region59: #{tpu_custom_call.1} parent=35 // pred_region
          %s919 = smul.u32 2, %s45
          %921 = vsyncadd %s912, 0
          %s922 = smul.addr %s44, 2
          %s923 = sadd.s32 %s919, %s922
          %s924 = smul.addr %s923, 8
          %s925 = scalar_lea.hbm %s7, %s924
          %s926 = sshll.u32 %s915, 4
          %s927 = int_to_ptr.vmem [resolvable:$true] %s926
          %s928 = sshll.u32 %s925, 4
          %s929 = int_to_ptr.hbm [resolvable:$true] %s928
          %934 = dma.vmem_to_hbm [thread:$0]  %s927, 256, %s929, %s912, 128, 128, 8
        $region60: #{tpu_custom_call.1} parent=35 // pred_fallthru
          _
      $region36: #{tpu_custom_call.1} parent=5 // pred_fallthru
        _
      %p935 = scmp.le.s32.totalorder 2, %s34
      // Predicated region
      $region61: #{tpu_custom_call.1} parent=5 // pred_check
        %p936 = pneg %p935
      $region62: #{tpu_custom_call.1} parent=5 // pred_check_branch
        %938 = sbr.rel (%p936) target = $region64
      $region63: #{tpu_custom_call.1} parent=5 // pred_region
        %s939 = ssub.s32 %s34, 2
        // Predicated region
        $region65: #{tpu_custom_call.1} parent=63 // pred_check
          %p940 = pneg %p236
        $region66: #{tpu_custom_call.1} parent=63 // pred_check_branch
          %942 = sbr.rel (%p940) target = $region68
        $region67: #{tpu_custom_call.1} parent=63 // pred_region
          %s943 = sand.u32 %s221, 1
          %s944 = scalar_lea.sflag [#allocation11], %s943
          %s945 = sand.u32 %s221, 1
          %s946 = smul.addr %s945, 16
          %s947 = scalar_lea.vmem [#allocation10], %s946
          %949 = dma.done %s944, 256
        $region68: #{tpu_custom_call.1} parent=63 // pred_fallthru
          _
      $region64: #{tpu_custom_call.1} parent=5 // pred_fallthru
        _
    $region6: #{tpu_custom_call.1} parent=1 // loop_footer
      %s38 = sadd.s32 1, %s34
    $region7: #{tpu_custom_call.1} parent=1 // loop_footer_branch
      %33 = sbr.rel target = $region3
    $region8: #{tpu_custom_call.1} parent=1 // loop_exit
      _
    %950 = vsyncpa [#allocation11], 1
    %s951 = scalar_lea.sflag [#allocation11], 1
    %952 = vsyncpa %s951, 1

</llo_original>
